<compile_context>
chip_gen: v6e
topology: v6e:2x2x1
jax: 0.10.0
libtpu: 0.0.40
codegen_flags: <defaults>
</compile_context>

<pallas_src>
import math

import jax
import jax.numpy as jnp
from jax.experimental import pallas as pl
from jax.experimental.pallas import tpu as pltpu


def _round_up(x, m):
    return ((x + m - 1) // m) * m


def _tpu_vmem_and_multicore():
    """Best-effort per-generation hardware query (safe fallbacks)."""
    vmem_cap = 64 * 1024 * 1024          # conservative default = v7x physical
    multi_core = False
    try:
        info = pltpu.get_tpu_info()
        vmem_cap = int(getattr(info, "vmem_capacity_bytes", vmem_cap))
        for name in ("num_cores", "tensorcores_per_chip", "num_tensorcores"):
            val = getattr(info, name, None)
            if val is not None:
                multi_core = int(val) > 1
                break
    except Exception:
        pass
    try:
        kind = jax.devices()[0].device_kind.lower()
        if "v7" in kind:
            multi_core = True
    except Exception:
        pass
    return vmem_cap, multi_core


def _per_row_vmem_bytes(K, D, E, Hp):
    """Live VMEM bytes per batch row inside one grid step (f32).

    Double-buffered I/O blocks (topk, t_embed, refined, weights) plus the
    hidden activation h and the h*w2 temporary, which dominate at Hp>=256.
    """
    io = 2 * (K * D + E + D + K)          # double-buffered input/output tiles
    act = 2 * K * Hp + Hp                 # h, h*w2 temp, per-row bias
    return 4 * (io + act)


def _choose_tb(B, K, D, E, Hp, vmem_budget_bytes, multi_core):
    """Pick the batch-tile size TB.

    - Largest TB (capped at 1024) whose live VMEM footprint fits the budget.
    - Never larger than round_up(B, 8): small batches use one tile, no waste.
    - Only on multi-TC chips (v7x) do we shrink TB to keep >= 2 grid steps so
      the "parallel" axis can be sharded across TensorCores; on v5e/v6e the
      grid is a serial loop and splitting only adds per-step overhead.
    """
    per_row = _per_row_vmem_bytes(K, D, E, Hp)
    tb_vmem_cap = max(8, vmem_budget_bytes // max(1, per_row))
    tb = min(1024, tb_vmem_cap, _round_up(B, 8))
    tb = max(8, (tb // 8) * 8)            # sublane-dense tiles
    if multi_core:
        while tb > 8 and pl.cdiv(B, tb) < 2:
            tb //= 2
        tb = max(8, (tb // 8) * 8)
    return tb


def _refine_kernel(topk_ref, t_ref, w1v_ref, w1t_ref, b1_ref, w2_ref,
                   refined_ref, weights_ref):
    # topk_ref   : (TB, K, D)
    # t_ref      : (TB, E)
    # w1v_ref    : (D, Hp), w1t_ref: (E, Hp), b1_ref: (1, Hp), w2_ref: (1, Hp)
    # refined_ref: (TB, D), weights_ref: (TB, K)
    TB, K, D = topk_ref.shape
    Hp = w1v_ref.shape[1]

    topk = topk_ref[...]                                        # (TB, K, D)

    # Per-batch-row bias: t @ W1_t + b1 (t-projection and bias folded; one
    # broadcast over K instead of two).
    bias = jnp.dot(t_ref[...], w1t_ref[...],
                   preferred_element_type=jnp.float32) + b1_ref[...]   # (TB, Hp)

    # One big MXU matmul over all TB*K rows (free reshape: same tile layout).
    x = topk.reshape(TB * K, D)
    h = jnp.dot(x, w1v_ref[...], preferred_element_type=jnp.float32)    # (TB*K, Hp)
    h = h.reshape(TB, K, Hp) + bias[:, None, :]
    h = jnp.maximum(h, 0.0)

    # Second linear has a single output unit: VPU multiply + lane reduction
    # instead of an N=1 MXU matmul.  Scores stay lane-oriented over K, so no
    # transpose is needed and the softmax reductions are per-row lane reduces.
    scores = jnp.sum(h * w2_ref[...], axis=-1)                          # (TB, K)

    # softmax(scores / 0.1) over K.  (b2 is a constant per-row shift and
    # cancels exactly in the softmax, so it is omitted.)
    s = scores * 10.0
    m = jnp.max(s, axis=-1, keepdims=True)                              # (TB, 1)
    e = jnp.exp(s - m)
    inv = 1.0 / jnp.sum(e, axis=-1, keepdims=True)                      # once per row
    w = e * inv                                                         # (TB, K)
    weights_ref[...] = w

    # sum_k w_k == 1  =>  anchor + sum_k w_k*(topk_k - anchor) == sum_k w_k*topk_k
    # so the anchor input is never needed (saves its HBM stream entirely).
    refined_ref[...] = jnp.sum(w[:, :, None] * topk, axis=1)            # (TB, D)


def refine_noise_net_forward(topk_vectors, anchor_vector, t_embed,
                             w1_v, w1_t, b1, w2, b2=None):
    """Pallas forward.  Returns (refined (B, D), weights (B, K))."""
    del anchor_vector  # cancels exactly: refined = sum_k w_k * topk_k (sum w = 1)
    del b2             # constant shift of all scores -> cancels in the softmax
    B, K, D = topk_vectors.shape
    E = t_embed.shape[1]
    H = w1_v.shape[1]

    f32 = jnp.float32
    topk_vectors = topk_vectors.astype(f32)
    t_embed = t_embed.astype(f32)

    # Zero-pad the hidden dim to a lane-dense multiple of 128 (exact math:
    # padded columns produce relu(0)=0 hidden units with zero w2 weight).
    Hp = max(128, _round_up(H, 128))
    pad_h = Hp - H
    w1_v_p = jnp.pad(w1_v.astype(f32), ((0, 0), (0, pad_h)))
    w1_t_p = jnp.pad(w1_t.astype(f32), ((0, 0), (0, pad_h)))
    b1_p = jnp.pad(b1.astype(f32).reshape(1, H), ((0, 0), (0, pad_h)))
    w2_p = jnp.pad(w2.astype(f32).reshape(1, H), ((0, 0), (0, pad_h)))
    # Note: D (=64 typically) is deliberately NOT padded to 128 — topk is the
    # dominant HBM stream and padding would double input bytes.

    # Per-generation VMEM budgeting.
    vmem_cap, multi_core = _tpu_vmem_and_multicore()
    # Scoped-VMEM limit: ~48 MiB on v7x (64 MiB physical), 64 MiB on v5e/v6e.
    vmem_limit = max(32 * 1024 * 1024, min(3 * vmem_cap // 4, 64 * 1024 * 1024))
    tb_budget = int(0.6 * vmem_limit)     # headroom for compiler temps / spills

    tb = _choose_tb(B, K, D, E, Hp, tb_budget, multi_core)
    Bp = _round_up(B, tb)
    if Bp != B:
        pad_b = Bp - B
        topk_vectors = jnp.pad(topk_vectors, ((0, pad_b), (0, 0), (0, 0)))
        t_embed = jnp.pad(t_embed, ((0, pad_b), (0, 0)))

    grid_spec = pltpu.PrefetchScalarGridSpec(
        num_scalar_prefetch=0,
        grid=(Bp // tb,),
        in_specs=[
            pl.BlockSpec((tb, K, D), lambda b: (b, 0, 0)),   # topk_vectors
            pl.BlockSpec((tb, E),    lambda b: (b, 0)),      # t_embed
            pl.BlockSpec((D, Hp),    lambda b: (0, 0)),      # W1_v (resident)
            pl.BlockSpec((E, Hp),    lambda b: (0, 0)),      # W1_t (resident)
            pl.BlockSpec((1, Hp),    lambda b: (0, 0)),      # b1
            pl.BlockSpec((1, Hp),    lambda b: (0, 0)),      # w2 (row vector)
        ],
        out_specs=[
            pl.BlockSpec((tb, D), lambda b: (b, 0)),         # refined
            pl.BlockSpec((tb, K), lambda b: (b, 0)),         # weights
        ],
    )

    refined, weights = pl.pallas_call(
        _refine_kernel,
        out_shape=(
            jax.ShapeDtypeStruct((Bp, D), f32),
            jax.ShapeDtypeStruct((Bp, K), f32),
        ),
        grid_spec=grid_spec,
        compiler_params=pltpu.CompilerParams(
            dimension_semantics=("parallel",),
            vmem_limit_bytes=vmem_limit),
    )(topk_vectors, t_embed, w1_v_p, w1_t_p, b1_p, w2_p)

    return refined[:B], weights[:B]


def _reference_forward(topk_vectors, anchor_vector, t_embed, w1_v, w1_t, b1, w2, b2):
    B, K, D = topk_vectors.shape
    t_exp = jnp.broadcast_to(t_embed[:, None, :], (B, K, t_embed.shape[1]))
    x = jnp.concatenate([topk_vectors, t_exp], axis=-1)
    w1 = jnp.concatenate([w1_v, w1_t], axis=0)
    h = jnp.maximum(x @ w1 + b1, 0.0)
    scores = (h @ w2.reshape(-1, 1)).squeeze(-1) + b2
    weights = jax.nn.softmax(scores / 0.1, axis=-1)
    diff = topk_vectors - anchor_vector[:, None, :]
    refined = anchor_vector + jnp.sum(weights[..., None] * diff, axis=1)
    return refined, weights


def _make_inputs(key, B, K, D, E, H):
    k_topk, k_anchor, k_t, k_w1, k_b1, k_w2, k_b2 = jax.random.split(key, 7)
    topk = jax.random.normal(k_topk, (B, K, D), jnp.float32)
    anchor = jax.random.normal(k_anchor, (B, D), jnp.float32)
    t = jax.random.normal(k_t, (B, E), jnp.float32)
    fan_in1 = D + E
    bnd1 = 1.0 / math.sqrt(fan_in1)
    w1_full = jax.random.uniform(k_w1, (fan_in1, H), jnp.float32, -bnd1, bnd1)
    w1_v = w1_full[:D]
    w1_t = w1_full[D:]
    b1 = jax.random.uniform(k_b1, (H,), jnp.float32, -bnd1, bnd1)
    bnd2 = 1.0 / math.sqrt(H)
    w2 = jax.random.uniform(k_w2, (H,), jnp.float32, -bnd2, bnd2)
    b2 = jax.random.uniform(k_b2, (), jnp.float32, -bnd2, bnd2)
    return topk, anchor, t, w1_v, w1_t, b1, w2, b2


def _check(B, K, D, E, H, key):
    args = _make_inputs(key, B, K, D, E, H)
    refined, weights = refine_noise_net_forward(*args)
    jax.block_until_ready((refined, weights))
    ref_refined, ref_weights = _reference_forward(*args)
    assert refined.shape == (B, D) and weights.shape == (B, K)
    assert jnp.allclose(refined, ref_refined, atol=1e-4, rtol=1e-4)
    assert jnp.allclose(weights, ref_weights, atol=1e-4, rtol=1e-4)


if __name__ == "__main__":
    key = jax.random.PRNGKey(0)
    k1, k2, k3 = jax.random.split(key, 3)

    # Small case (single grid step, TB capped at round_up(B, 8)).
    _check(B=2, K=8, D=64, E=32, H=32, key=k1)

    # Ragged small batch + module-default hidden_dim: one tile on v5e/v6e,
    # exercises batch padding and the Hp=256 lane-dense hidden path.
    _check(B=20, K=8, D=64, E=32, H=256, key=k2)

    # Larger batch: exercises the raised TB cap (big VMEM-budgeted tiles) and
    # a multi-step "parallel" grid.
    _check(B=2048, K=8, D=64, E=32, H=256, key=k3)

    print("KERNEL_OK")
</pallas_src>

<mosaic_0001>
module attributes {stable_mosaic.version = 11 : i64} {
  func.func @_refine_kernel(%arg0: i32, %arg1: memref<8x8x64xf32, #tpu.memory_space<vmem>>, %arg2: memref<8x32xf32, #tpu.memory_space<vmem>>, %arg3: memref<64x128xf32, #tpu.memory_space<vmem>>, %arg4: memref<32x128xf32, #tpu.memory_space<vmem>>, %arg5: memref<1x128xf32, #tpu.memory_space<vmem>>, %arg6: memref<1x128xf32, #tpu.memory_space<vmem>>, %arg7: memref<8x64xf32, #tpu.memory_space<vmem>>, %arg8: memref<8x8xf32, #tpu.memory_space<vmem>>) attributes {dimension_semantics = [#tpu.dimension_semantics<parallel>], iteration_bounds = array<i64: 1>, scalar_prefetch = 0 : i64, scratch_operands = 0 : i64, tpu.core_type = #tpu.core_type<tc>, window_params = [{transform_indices = @transform_0, window_bounds = array<i64: 8, 8, 64>}, {transform_indices = @transform_1, window_bounds = array<i64: 8, 32>}, {pipeline_mode = #tpu.pipeline_mode<synchronous>, transform_indices = @transform_2, window_bounds = array<i64: 64, 128>}, {pipeline_mode = #tpu.pipeline_mode<synchronous>, transform_indices = @transform_3, window_bounds = array<i64: 32, 128>}, {pipeline_mode = #tpu.pipeline_mode<synchronous>, transform_indices = @transform_4, window_bounds = array<i64: 1, 128>}, {pipeline_mode = #tpu.pipeline_mode<synchronous>, transform_indices = @transform_5, window_bounds = array<i64: 1, 128>}, {transform_indices = @transform_6, window_bounds = array<i64: 8, 64>}, {transform_indices = @transform_7, window_bounds = array<i64: 8, 8>}]} {
    %c0 = arith.constant 0 : index
    %c0_0 = arith.constant 0 : index
    %c0_1 = arith.constant 0 : index
    %0 = vector.load %arg1[%c0, %c0_0, %c0_1] : memref<8x8x64xf32, #tpu.memory_space<vmem>>, vector<8x8x64xf32>
    %c0_2 = arith.constant 0 : index
    %c0_3 = arith.constant 0 : index
    %1 = vector.load %arg2[%c0_2, %c0_3] : memref<8x32xf32, #tpu.memory_space<vmem>>, vector<8x32xf32>
    %c0_4 = arith.constant 0 : index
    %c0_5 = arith.constant 0 : index
    %2 = vector.load %arg4[%c0_4, %c0_5] : memref<32x128xf32, #tpu.memory_space<vmem>>, vector<32x128xf32>
    %cst = arith.constant dense<0.000000e+00> : vector<8x128xf32>
    %3 = tpu.matmul %1, %2, %cst {dimension_numbers = #tpu.dot_dimension_numbers<[1], [0], [0], [1], [0, 0, 1, 1], [], []>} : vector<8x32xf32>, vector<32x128xf32>, vector<8x128xf32> -> vector<8x128xf32>
    %c0_6 = arith.constant 0 : index
    %c0_7 = arith.constant 0 : index
    %4 = vector.load %arg5[%c0_6, %c0_7] : memref<1x128xf32, #tpu.memory_space<vmem>>, vector<1x128xf32>
    %5 = vector.broadcast %4 : vector<1x128xf32> to vector<8x128xf32>
    %6 = arith.addf %3, %5 : vector<8x128xf32>
    %7 = vector.shape_cast %0 : vector<8x8x64xf32> to vector<64x64xf32>
    %c0_8 = arith.constant 0 : index
    %c0_9 = arith.constant 0 : index
    %8 = vector.load %arg3[%c0_8, %c0_9] : memref<64x128xf32, #tpu.memory_space<vmem>>, vector<64x128xf32>
    %cst_10 = arith.constant dense<0.000000e+00> : vector<64x128xf32>
    %9 = tpu.matmul %7, %8, %cst_10 {dimension_numbers = #tpu.dot_dimension_numbers<[1], [0], [0], [1], [0, 0, 1, 1], [], []>} : vector<64x64xf32>, vector<64x128xf32>, vector<64x128xf32> -> vector<64x128xf32>
    %10 = vector.shape_cast %9 : vector<64x128xf32> to vector<8x8x128xf32>
    %11 = vector.shape_cast %6 : vector<8x128xf32> to vector<8x1x128xf32>
    %12 = vector.broadcast %11 : vector<8x1x128xf32> to vector<8x8x128xf32>
    %13 = arith.addf %10, %12 : vector<8x8x128xf32>
    %cst_11 = arith.constant 0.000000e+00 : f32
    %14 = vector.broadcast %cst_11 : f32 to vector<8x8x128xf32>
    %15 = arith.maximumf %13, %14 : vector<8x8x128xf32>
    %c0_12 = arith.constant 0 : index
    %c0_13 = arith.constant 0 : index
    %16 = vector.load %arg6[%c0_12, %c0_13] : memref<1x128xf32, #tpu.memory_space<vmem>>, vector<1x128xf32>
    %17 = vector.shape_cast %16 : vector<1x128xf32> to vector<1x1x128xf32>
    %18 = vector.broadcast %17 : vector<1x1x128xf32> to vector<8x8x128xf32>
    %19 = arith.mulf %15, %18 : vector<8x8x128xf32>
    %cst_14 = arith.constant dense<0.000000e+00> : vector<8x8xf32>
    %20 = vector.multi_reduction <add>, %19, %cst_14 [2] : vector<8x8x128xf32> to vector<8x8xf32>
    %cst_15 = arith.constant 1.000000e+01 : f32
    %21 = vector.broadcast %cst_15 : f32 to vector<8x8xf32>
    %22 = arith.mulf %20, %21 : vector<8x8xf32>
    %cst_16 = arith.constant dense<0xFF800000> : vector<8xf32>
    %23 = vector.multi_reduction <maximumf>, %22, %cst_16 [1] : vector<8x8xf32> to vector<8xf32>
    %24 = vector.shape_cast %23 : vector<8xf32> to vector<8x1xf32>
    %25 = vector.broadcast %24 : vector<8x1xf32> to vector<8x8xf32>
    %26 = arith.subf %22, %25 : vector<8x8xf32>
    %27 = math.exp %26 : vector<8x8xf32>
    %cst_17 = arith.constant dense<0.000000e+00> : vector<8xf32>
    %28 = vector.multi_reduction <add>, %27, %cst_17 [1] : vector<8x8xf32> to vector<8xf32>
    %29 = vector.shape_cast %28 : vector<8xf32> to vector<8x1xf32>
    %cst_18 = arith.constant 1.000000e+00 : f32
    %30 = vector.broadcast %cst_18 : f32 to vector<8x1xf32>
    %31 = arith.divf %30, %29 : vector<8x1xf32>
    %32 = vector.broadcast %31 : vector<8x1xf32> to vector<8x8xf32>
    %33 = arith.mulf %27, %32 : vector<8x8xf32>
    %c0_19 = arith.constant 0 : index
    %c0_20 = arith.constant 0 : index
    %34 = vector.load %arg8[%c0_19, %c0_20] : memref<8x8xf32, #tpu.memory_space<vmem>>, vector<8x8xf32>
    tpu.vector_store %arg8[%c0_19, %c0_20], %33 {strides = array<i32>} : memref<8x8xf32, #tpu.memory_space<vmem>>, vector<8x8xf32>,
    %35 = vector.shape_cast %33 : vector<8x8xf32> to vector<8x8x1xf32>
    %36 = vector.broadcast %35 : vector<8x8x1xf32> to vector<8x8x64xf32>
    %37 = arith.mulf %36, %0 : vector<8x8x64xf32>
    %cst_21 = arith.constant dense<0.000000e+00> : vector<8x64xf32>
    %38 = vector.multi_reduction <add>, %37, %cst_21 [1] : vector<8x8x64xf32> to vector<8x64xf32>
    %c0_22 = arith.constant 0 : index
    %c0_23 = arith.constant 0 : index
    %39 = vector.load %arg7[%c0_22, %c0_23] : memref<8x64xf32, #tpu.memory_space<vmem>>, vector<8x64xf32>
    tpu.vector_store %arg7[%c0_22, %c0_23], %38 {strides = array<i32>} : memref<8x64xf32, #tpu.memory_space<vmem>>, vector<8x64xf32>,
    return
  }
  func.func @transform_0(%arg0: i32) -> (i32, i32, i32) {
    %c0_i32 = arith.constant 0 : i32
    %c0_i32_0 = arith.constant 0 : i32
    %c0_i32_1 = arith.constant 0 : i32
    return %arg0, %c0_i32, %c0_i32_0 : i32, i32, i32
  }
  func.func @transform_1(%arg0: i32) -> (i32, i32) {
    %c0_i32 = arith.constant 0 : i32
    %c0_i32_0 = arith.constant 0 : i32
    return %arg0, %c0_i32 : i32, i32
  }
  func.func @transform_2(%arg0: i32) -> (i32, i32) {
    %c0_i32 = arith.constant 0 : i32
    %c0_i32_0 = arith.constant 0 : i32
    %c0_i32_1 = arith.constant 0 : i32
    return %c0_i32, %c0_i32_0 : i32, i32
  }
  func.func @transform_3(%arg0: i32) -> (i32, i32) {
    %c0_i32 = arith.constant 0 : i32
    %c0_i32_0 = arith.constant 0 : i32
    %c0_i32_1 = arith.constant 0 : i32
    return %c0_i32, %c0_i32_0 : i32, i32
  }
  func.func @transform_4(%arg0: i32) -> (i32, i32) {
    %c0_i32 = arith.constant 0 : i32
    %c0_i32_0 = arith.constant 0 : i32
    %c0_i32_1 = arith.constant 0 : i32
    return %c0_i32, %c0_i32_0 : i32, i32
  }
  func.func @transform_5(%arg0: i32) -> (i32, i32) {
    %c0_i32 = arith.constant 0 : i32
    %c0_i32_0 = arith.constant 0 : i32
    %c0_i32_1 = arith.constant 0 : i32
    return %c0_i32, %c0_i32_0 : i32, i32
  }
  func.func @transform_6(%arg0: i32) -> (i32, i32) {
    %c0_i32 = arith.constant 0 : i32
    %c0_i32_0 = arith.constant 0 : i32
    return %arg0, %c0_i32 : i32, i32
  }
  func.func @transform_7(%arg0: i32) -> (i32, i32) {
    %c0_i32 = arith.constant 0 : i32
    %c0_i32_0 = arith.constant 0 : i32
    return %arg0, %c0_i32 : i32, i32
  }
}

</mosaic_0001>

<llo_original>
// kernel: tpu_custom_call.1
$region0: #{tpu_custom_call.1}
  #allocation0 [shape = 'u32[]', space=smem, size = 0x4, offset = 0x4, fixed_abs, tag = 'smem constant byte address 0x4 - core index']
  #allocation1 [shape = 'u32[144,128]{1,0:T(1,128)}', space=vmem, size = 0x12000, scoped, tag = 'internal scratch']
  %s0 = inlined_call_operand.hbm [shape: f32[8,8,64], index: 0, kind: input, shape index: {}]
  %s1 = inlined_call_operand.hbm [shape: f32[8,32], index: 1, kind: input, shape index: {}]
  %s2 = inlined_call_operand.hbm [shape: f32[64,128], index: 2, kind: input, shape index: {}]
  %s3 = inlined_call_operand.hbm [shape: f32[32,128], index: 3, kind: input, shape index: {}]
  %s4 = inlined_call_operand.vmem [shape: f32[1,128], index: 4, kind: input, shape index: {}]
  %s5 = inlined_call_operand.vmem [shape: f32[1,128], index: 5, kind: input, shape index: {}]
  %s6 = inlined_call_operand.hbm [shape: f32[8,64], index: 6, kind: output, shape index: {0}]
  %s7 = inlined_call_operand.hbm [shape: f32[8,8], index: 7, kind: output, shape index: {1}]
  %8 = xla_tuple %s6, %s7
  %s9 = sld [smem:[#allocation0]]
  $region58: #{tpu_custom_call.1} parent=0
    _
  %s11 = ssub.s32 1, %s9
  %s12 = scalar_select 0, %s11, %s9
  $region1: #{tpu_custom_call.1} parent=0
    #allocation2 [shape = 'u8[32768]{0}', space=vmem, size = 0x8000, scoped, tag = 'input window, operand 0, single buffered']
    #allocation3 [shape = 's32[1]{0}', space=sflag, size = 0x4, scoped, tag = 'scoped memory for tpu_custom_call.1']
    #allocation4 [shape = 's32[1]{0}', space=sflag, size = 0x4, scoped, tag = 'scoped memory for tpu_custom_call.1']
    #allocation5 [shape = 'u8[4096]{0}', space=vmem, size = 0x1000, scoped, tag = 'input window, operand 1, single buffered']
    #allocation6 [shape = 's32[1]{0}', space=sflag, size = 0x4, scoped, tag = 'scoped memory for tpu_custom_call.1']
    #allocation7 [shape = 'u8[32768]{0}', space=vmem, size = 0x8000, scoped, tag = 'input window, operand 2, single buffered']
    #allocation8 [shape = 'u8[16384]{0}', space=vmem, size = 0x4000, scoped, tag = 'input window, operand 3, single buffered']
    #allocation9 [shape = 's32[1]{0}', space=sflag, size = 0x4, scoped, tag = 'scoped memory for tpu_custom_call.1']
    #allocation10 [shape = 'u8[4096]{0}', space=vmem, size = 0x1000, scoped, tag = 'output window, operand 0, single buffered']
    #allocation11 [shape = 'u8[4096]{0}', space=vmem, size = 0x1000, scoped, tag = 'output window, operand 1, single buffered']
    #allocation12 [shape = 's32[1]{0}', space=sflag, size = 0x4, scoped, tag = 'scoped memory for tpu_custom_call.1']
    %13 = vsyncpa [#allocation3], 0
    %14 = vsyncpa [#allocation6], 0
    %15 = vsyncpa [#allocation9], 0
    %16 = vsyncpa [#allocation4], 0
    %17 = vsyncpa [#allocation12], 0
    // Predicated region
    $region2: #{tpu_custom_call.1} parent=1 // pred_check
      _
    $region3: #{tpu_custom_call.1} parent=1 // pred_check_branch
      %19 = sbr.rel (0) target = $region5
    $region4: #{tpu_custom_call.1} parent=1 // pred_region
      %s21 = ssub.s32 1024, 1024
      %22 = vsyncadd [#allocation3], %s21
      %s23 = sshll.u32 [#allocation2], 4
      %s24 = int_to_ptr.vmem [resolvable:$true] %s23
      %29 = dma.hbm_to_vmem [thread:$0]  %s0, 1024, %s24, [#allocation3], 128, 128, 8
    $region5: #{tpu_custom_call.1} parent=1 // pred_fallthru
      _
    // Predicated region
    $region6: #{tpu_custom_call.1} parent=1 // pred_check
      _
    $region7: #{tpu_custom_call.1} parent=1 // pred_check_branch
      %31 = sbr.rel (0) target = $region9
    $region8: #{tpu_custom_call.1} parent=1 // pred_region
      %s33 = ssub.s32 128, 128
      %34 = vsyncadd [#allocation6], %s33
      %s36 = sshll.u32 [#allocation5], 4
      %s37 = int_to_ptr.vmem [resolvable:$true] %s36
      %39 = dma.hbm_to_vmem [thread:$0]  %s1, 128, %s37, [#allocation6]
    $region9: #{tpu_custom_call.1} parent=1 // pred_fallthru
      _
    // Predicated region
    $region10: #{tpu_custom_call.1} parent=1 // pred_check
      _
    $region11: #{tpu_custom_call.1} parent=1 // pred_check_branch
      %41 = sbr.rel (0) target = $region13
    $region12: #{tpu_custom_call.1} parent=1 // pred_region
      %s43 = ssub.s32 1024, 1024
      %44 = vsyncadd [#allocation6], %s43
      %s45 = sshll.u32 [#allocation7], 4
      %s46 = int_to_ptr.vmem [resolvable:$true] %s45
      %51 = dma.hbm_to_vmem [thread:$0]  %s2, 1024, %s46, [#allocation6], 128, 128, 8
    $region13: #{tpu_custom_call.1} parent=1 // pred_fallthru
      _
    // Predicated region
    $region14: #{tpu_custom_call.1} parent=1 // pred_check
      _
    $region15: #{tpu_custom_call.1} parent=1 // pred_check_branch
      %53 = sbr.rel (0) target = $region17
    $region16: #{tpu_custom_call.1} parent=1 // pred_region
      %s55 = ssub.s32 512, 512
      %56 = vsyncadd [#allocation9], %s55
      %s57 = sshll.u32 [#allocation8], 4
      %s58 = int_to_ptr.vmem [resolvable:$true] %s57
      %63 = dma.hbm_to_vmem [thread:$0]  %s3, 512, %s58, [#allocation9], 128, 128, 8
    $region17: #{tpu_custom_call.1} parent=1 // pred_fallthru
      _
    // Predicated region
    $region18: #{tpu_custom_call.1} parent=1 // pred_check
      _
    $region19: #{tpu_custom_call.1} parent=1 // pred_check_branch
      %65 = sbr.rel (0) target = $region21
    $region20: #{tpu_custom_call.1} parent=1 // pred_region
      _
    $region21: #{tpu_custom_call.1} parent=1 // pred_fallthru
      _
    // Predicated region
    $region22: #{tpu_custom_call.1} parent=1 // pred_check
      _
    $region23: #{tpu_custom_call.1} parent=1 // pred_check_branch
      %67 = sbr.rel (0) target = $region25
    $region24: #{tpu_custom_call.1} parent=1 // pred_region
      _
    $region25: #{tpu_custom_call.1} parent=1 // pred_fallthru
      _
    // Predicated region
    $region26: #{tpu_custom_call.1} parent=1 // pred_check
      _
    $region27: #{tpu_custom_call.1} parent=1 // pred_check_branch
      %69 = sbr.rel (0) target = $region29
    $region28: #{tpu_custom_call.1} parent=1 // pred_region
      %70 = dma.done [#allocation3], 1024
    $region29: #{tpu_custom_call.1} parent=1 // pred_fallthru
      _
    // Predicated region
    $region30: #{tpu_custom_call.1} parent=1 // pred_check
      _
    $region31: #{tpu_custom_call.1} parent=1 // pred_check_branch
      %72 = sbr.rel (0) target = $region33
    $region32: #{tpu_custom_call.1} parent=1 // pred_region
      %73 = dma.done [#allocation6], 128
    $region33: #{tpu_custom_call.1} parent=1 // pred_fallthru
      _
    // Predicated region
    $region34: #{tpu_custom_call.1} parent=1 // pred_check
      _
    $region35: #{tpu_custom_call.1} parent=1 // pred_check_branch
      %75 = sbr.rel (0) target = $region37
    $region36: #{tpu_custom_call.1} parent=1 // pred_region
      %76 = dma.done [#allocation6], 1024
    $region37: #{tpu_custom_call.1} parent=1 // pred_fallthru
      _
    // Predicated region
    $region38: #{tpu_custom_call.1} parent=1 // pred_check
      _
    $region39: #{tpu_custom_call.1} parent=1 // pred_check_branch
      %78 = sbr.rel (0) target = $region41
    $region40: #{tpu_custom_call.1} parent=1 // pred_region
      %79 = dma.done [#allocation9], 512
    $region41: #{tpu_custom_call.1} parent=1 // pred_fallthru
      _
    %v80 = vld [vmem:[#allocation2] sm:$0xff]
    %v81 = vld [vmem:[#allocation2 + $0x8] sm:$0xff]
    %v82 = vld [vmem:[#allocation2 + $0x10] sm:$0xff]
    %v83 = vld [vmem:[#allocation2 + $0x18] sm:$0xff]
    %v84 = vld [vmem:[#allocation2 + $0x20] sm:$0xff]
    %v85 = vld [vmem:[#allocation2 + $0x28] sm:$0xff]
    %v86 = vld [vmem:[#allocation2 + $0x30] sm:$0xff]
    %v87 = vld [vmem:[#allocation2 + $0x38] sm:$0xff]
    %v88 = vld [vmem:[#allocation5] sm:$0xff]
    %v89 = vld [vmem:[#allocation8] sm:$0xff]
    %v90 = vld [vmem:[#allocation8 + $0x8] sm:$0xff]
    %v91 = vld [vmem:[#allocation8 + $0x10] sm:$0xff]
    %v92 = vld [vmem:[#allocation8 + $0x18] sm:$0xff]
    %v93 = vld [vmem:[%s4] sm:$0x1]
    %v95 = vlaneseq
    %v96 = vshrl.u32 %v95, 7
    %v97 = vsub.s32 0, %v96
    %v98 = vrot.slane %v93, %v97
    %vm100 = vcmask 261120
    %v102 = vsel %vm100, %v88, 0
    %104 = vmatprep.subr.mxu0 0.0
    %105 = vmatpush1.msra.mxu0 0.0
    %106 = vmatprep.subr.mxu0 0.0
    %107 = vmatpush1.msra.mxu0 0.0
    %108 = vmatprep.subr.mxu0 0.0
    %109 = vmatpush1.msra.mxu0 0.0
    %110 = vmatprep.subr.mxu0 0.0
    %111 = vmatpush1.msra.mxu0 0.0
    %112 = vmatprep.subr.mxu0 0.0
    %113 = vmatpush1.msra.mxu0 0.0
    %114 = vmatprep.subr.mxu0 0.0
    %115 = vmatpush1.msra.mxu0 0.0
    %116 = vmatprep.subr.mxu0 0.0
    %117 = vmatpush1.msra.mxu0 0.0
    %118 = vmatprep.subr.mxu0 0.0
    %119 = vmatpush1.msra.mxu0 0.0
    %120 = vmatprep.subr.mxu0 0.0
    %121 = vmatpush1.msra.mxu0 0.0
    %122 = vmatprep.subr.mxu0 0.0
    %123 = vmatpush1.msra.mxu0 0.0
    %124 = vmatprep.subr.mxu0 0.0
    %125 = vmatpush1.msra.mxu0 0.0
    %126 = vmatprep.subr.mxu0 0.0
    %127 = vmatpush1.msra.mxu0 0.0
    %128 = vmatprep.subr.mxu0 0.0
    %129 = vmatpush1.msra.mxu0 %v92
    %130 = vmatprep.subr.mxu0 0.0
    %131 = vmatpush1.msra.mxu0 %v91
    %132 = vmatprep.subr.mxu0 0.0
    %133 = vmatpush1.msra.mxu0 %v90
    %134 = vmatprep.subr.mxu0 0.0
    %135 = vmatpush1.msra.mxu0 %v89
    %136 = vmatprep.subr.mxu0 0.0
    %137 = vmatpush2.msra.mxu0 0.0
    %138 = vmatprep.subr.mxu0 0.0
    %139 = vmatpush2.msra.mxu0 0.0
    %140 = vmatprep.subr.mxu0 0.0
    %141 = vmatpush2.msra.mxu0 0.0
    %142 = vmatprep.subr.mxu0 0.0
    %143 = vmatpush2.msra.mxu0 0.0
    %144 = vmatprep.subr.mxu0 0.0
    %145 = vmatpush2.msra.mxu0 0.0
    %146 = vmatprep.subr.mxu0 0.0
    %147 = vmatpush2.msra.mxu0 0.0
    %148 = vmatprep.subr.mxu0 0.0
    %149 = vmatpush2.msra.mxu0 0.0
    %150 = vmatprep.subr.mxu0 0.0
    %151 = vmatpush2.msra.mxu0 0.0
    %152 = vmatprep.subr.mxu0 0.0
    %153 = vmatpush2.msra.mxu0 0.0
    %154 = vmatprep.subr.mxu0 0.0
    %155 = vmatpush2.msra.mxu0 0.0
    %156 = vmatprep.subr.mxu0 0.0
    %157 = vmatpush2.msra.mxu0 0.0
    %158 = vmatprep.subr.mxu0 0.0
    %159 = vmatpush2.msra.mxu0 0.0
    %160 = vmatprep.subr.mxu0 0.0
    %161 = vmatpush2.msra.mxu0 0.0
    %162 = vmatprep.subr.mxu0 0.0
    %163 = vmatpush2.msra.mxu0 0.0
    %164 = vmatprep.subr.mxu0 0.0
    %165 = vmatpush2.msra.mxu0 0.0
    %166 = vmatprep.subr.mxu0 0.0
    %167 = vmatpush2.msra.mxu0 0.0
    %168 = vmatprep.mubr.f32.mxu0 0.0
    %169 = vmatmul.mubr.f32.gmra.mxu0 %v102
    %v170 = vpop.f32.mrf.mxu0
    %v171 = vadd.f32 %v98, %v170
    %v172 = vpop.f32.mrf.mxu0
    %173 = vdwg.mxu0
    %v174 = vld [vmem:[#allocation7] sm:$0xff]
    %v175 = vld [vmem:[#allocation7 + $0x8] sm:$0xff]
    %v176 = vld [vmem:[#allocation7 + $0x10] sm:$0xff]
    %v177 = vld [vmem:[#allocation7 + $0x18] sm:$0xff]
    %v178 = vld [vmem:[#allocation7 + $0x20] sm:$0xff]
    %v179 = vld [vmem:[#allocation7 + $0x28] sm:$0xff]
    %v180 = vld [vmem:[#allocation7 + $0x30] sm:$0xff]
    %v181 = vld [vmem:[#allocation7 + $0x38] sm:$0xff]
    %vm182 = vcmask 523264
    %v184 = vsel %vm182, %v80, 0
    %v187 = vsel %vm182, %v81, 0
    %v190 = vsel %vm182, %v82, 0
    %v193 = vsel %vm182, %v83, 0
    %v196 = vsel %vm182, %v84, 0
    %v199 = vsel %vm182, %v85, 0
    %v202 = vsel %vm182, %v86, 0
    %v205 = vsel %vm182, %v87, 0
    %207 = vmatprep.subr.mxu0 0.0
    %208 = vmatpush1.msra.mxu0 0.0
    %209 = vmatprep.subr.mxu0 0.0
    %210 = vmatpush1.msra.mxu0 0.0
    %211 = vmatprep.subr.mxu0 0.0
    %212 = vmatpush1.msra.mxu0 0.0
    %213 = vmatprep.subr.mxu0 0.0
    %214 = vmatpush1.msra.mxu0 0.0
    %215 = vmatprep.subr.mxu0 0.0
    %216 = vmatpush1.msra.mxu0 0.0
    %217 = vmatprep.subr.mxu0 0.0
    %218 = vmatpush1.msra.mxu0 0.0
    %219 = vmatprep.subr.mxu0 0.0
    %220 = vmatpush1.msra.mxu0 0.0
    %221 = vmatprep.subr.mxu0 0.0
    %222 = vmatpush1.msra.mxu0 0.0
    %223 = vmatprep.subr.mxu0 0.0
    %224 = vmatpush1.msra.mxu0 %v181
    %225 = vmatprep.subr.mxu0 0.0
    %226 = vmatpush1.msra.mxu0 %v180
    %227 = vmatprep.subr.mxu0 0.0
    %228 = vmatpush1.msra.mxu0 %v179
    %229 = vmatprep.subr.mxu0 0.0
    %230 = vmatpush1.msra.mxu0 %v178
    %231 = vmatprep.subr.mxu0 0.0
    %232 = vmatpush1.msra.mxu0 %v177
    %233 = vmatprep.subr.mxu0 0.0
    %234 = vmatpush1.msra.mxu0 %v176
    %235 = vmatprep.subr.mxu0 0.0
    %236 = vmatpush1.msra.mxu0 %v175
    %237 = vmatprep.subr.mxu0 0.0
    %238 = vmatpush1.msra.mxu0 %v174
    %239 = vmatprep.subr.mxu0 0.0
    %240 = vmatpush2.msra.mxu0 0.0
    %241 = vmatprep.subr.mxu0 0.0
    %242 = vmatpush2.msra.mxu0 0.0
    %243 = vmatprep.subr.mxu0 0.0
    %244 = vmatpush2.msra.mxu0 0.0
    %245 = vmatprep.subr.mxu0 0.0
    %246 = vmatpush2.msra.mxu0 0.0
    %247 = vmatprep.subr.mxu0 0.0
    %248 = vmatpush2.msra.mxu0 0.0
    %249 = vmatprep.subr.mxu0 0.0
    %250 = vmatpush2.msra.mxu0 0.0
    %251 = vmatprep.subr.mxu0 0.0
    %252 = vmatpush2.msra.mxu0 0.0
    %253 = vmatprep.subr.mxu0 0.0
    %254 = vmatpush2.msra.mxu0 0.0
    %255 = vmatprep.subr.mxu0 0.0
    %256 = vmatpush2.msra.mxu0 0.0
    %257 = vmatprep.subr.mxu0 0.0
    %258 = vmatpush2.msra.mxu0 0.0
    %259 = vmatprep.subr.mxu0 0.0
    %260 = vmatpush2.msra.mxu0 0.0
    %261 = vmatprep.subr.mxu0 0.0
    %262 = vmatpush2.msra.mxu0 0.0
    %263 = vmatprep.subr.mxu0 0.0
    %264 = vmatpush2.msra.mxu0 0.0
    %265 = vmatprep.subr.mxu0 0.0
    %266 = vmatpush2.msra.mxu0 0.0
    %267 = vmatprep.subr.mxu0 0.0
    %268 = vmatpush2.msra.mxu0 0.0
    %269 = vmatprep.subr.mxu0 0.0
    %270 = vmatpush2.msra.mxu0 0.0
    %271 = vmatprep.mubr.f32.mxu0 0.0
    %272 = vmatmul.mubr.f32.gmra.mxu0 %v184
    %v273 = vpop.f32.mrf.mxu0
    %v274 = vadd.f32 0.0, %v273
    %v275 = vpop.f32.mrf.mxu0
    %276 = vmatprep.mubr.f32.mxu0 0.0
    %277 = vmatmul.mubr.f32.gmra.mxu0 %v187
    %v278 = vpop.f32.mrf.mxu0
    %v279 = vadd.f32 0.0, %v278
    %v280 = vpop.f32.mrf.mxu0
    %281 = vmatprep.mubr.f32.mxu0 0.0
    %282 = vmatmul.mubr.f32.gmra.mxu0 %v190
    %v283 = vpop.f32.mrf.mxu0
    %v284 = vadd.f32 0.0, %v283
    %v285 = vpop.f32.mrf.mxu0
    %286 = vmatprep.mubr.f32.mxu0 0.0
    %287 = vmatmul.mubr.f32.gmra.mxu0 %v193
    %v288 = vpop.f32.mrf.mxu0
    %v289 = vadd.f32 0.0, %v288
    %v290 = vpop.f32.mrf.mxu0
    %291 = vmatprep.mubr.f32.mxu0 0.0
    %292 = vmatmul.mubr.f32.gmra.mxu0 %v196
    %v293 = vpop.f32.mrf.mxu0
    %v294 = vadd.f32 0.0, %v293
    %v295 = vpop.f32.mrf.mxu0
    %296 = vmatprep.mubr.f32.mxu0 0.0
    %297 = vmatmul.mubr.f32.gmra.mxu0 %v199
    %v298 = vpop.f32.mrf.mxu0
    %v299 = vadd.f32 0.0, %v298
    %v300 = vpop.f32.mrf.mxu0
    %301 = vmatprep.mubr.f32.mxu0 0.0
    %302 = vmatmul.mubr.f32.gmra.mxu0 %v202
    %v303 = vpop.f32.mrf.mxu0
    %v304 = vadd.f32 0.0, %v303
    %v305 = vpop.f32.mrf.mxu0
    %306 = vmatprep.mubr.f32.mxu0 0.0
    %307 = vmatmul.mubr.f32.gmra.mxu0 %v205
    %v308 = vpop.f32.mrf.mxu0
    %v309 = vadd.f32 0.0, %v308
    %v310 = vpop.f32.mrf.mxu0
    %311 = vdwg.mxu0
    %v313 = vcombine.high %v171, %v171
    %v315 = vunpack.c.l.s4 1966171168
    %v316 = vunpack.c.0.s8 %v315
    %v317 = vlaneseq
    %v318 = vshrl.u32 %v317, 7
    %v319 = vsub.s32 %v316, %v318
    %v320 = vrot.slane %v171, %v319
    %v322 = vunpack.c.l.s4 1966171168
    %v323 = vunpack.c.0.s8 %v322
    %v324 = vlaneseq
    %v325 = vshrl.u32 %v324, 7
    %v326 = vsub.s32 %v323, %v325
    %v327 = vrot.slane %v313, %v326
    %v328 = vcombine.high %v320, %v320
    %v329 = vcombine.high %v327, %v327
    %v331 = vunpack.c.l.s4 1966171168
    %v332 = vunpack.c.0.s8 %v331
    %v333 = vlaneseq
    %v334 = vshrl.u32 %v333, 7
    %v335 = vsub.s32 %v332, %v334
    %v336 = vrot.slane %v320, %v335
    %v338 = vunpack.c.l.s4 1966171168
    %v339 = vunpack.c.0.s8 %v338
    %v340 = vlaneseq
    %v341 = vshrl.u32 %v340, 7
    %v342 = vsub.s32 %v339, %v341
    %v343 = vrot.slane %v327, %v342
    %v345 = vunpack.c.l.s4 1966171168
    %v346 = vunpack.c.0.s8 %v345
    %v347 = vlaneseq
    %v348 = vshrl.u32 %v347, 7
    %v349 = vsub.s32 %v346, %v348
    %v350 = vrot.slane %v328, %v349
    %v352 = vunpack.c.l.s4 1966171168
    %v353 = vunpack.c.0.s8 %v352
    %v354 = vlaneseq
    %v355 = vshrl.u32 %v354, 7
    %v356 = vsub.s32 %v353, %v355
    %v357 = vrot.slane %v329, %v356
    %v358 = vcombine.high %v336, %v336
    %v359 = vcombine.high %v343, %v343
    %v360 = vcombine.high %v350, %v350
    %v361 = vcombine.high %v357, %v357
    %v362 = vlaneseq
    %v363 = vshrl.u32 %v362, 7
    %v364 = vsub.s32 0, %v363
    %v365 = vrot.slane %v336, %v364
    %v366 = vlaneseq
    %v367 = vshrl.u32 %v366, 7
    %v368 = vsub.s32 0, %v367
    %v369 = vrot.slane %v350, %v368
    %v370 = vlaneseq
    %v371 = vshrl.u32 %v370, 7
    %v372 = vsub.s32 0, %v371
    %v373 = vrot.slane %v358, %v372
    %v374 = vlaneseq
    %v375 = vshrl.u32 %v374, 7
    %v376 = vsub.s32 0, %v375
    %v377 = vrot.slane %v360, %v376
    %v378 = vlaneseq
    %v379 = vshrl.u32 %v378, 7
    %v380 = vsub.s32 0, %v379
    %v381 = vrot.slane %v343, %v380
    %v382 = vlaneseq
    %v383 = vshrl.u32 %v382, 7
    %v384 = vsub.s32 0, %v383
    %v385 = vrot.slane %v357, %v384
    %v386 = vlaneseq
    %v387 = vshrl.u32 %v386, 7
    %v388 = vsub.s32 0, %v387
    %v389 = vrot.slane %v359, %v388
    %v390 = vlaneseq
    %v391 = vshrl.u32 %v390, 7
    %v392 = vsub.s32 0, %v391
    %v393 = vrot.slane %v361, %v392
    %v402 = vadd.f32 %v274, %v365
    %v403 = vadd.f32 %v279, %v369
    %v404 = vadd.f32 %v284, %v373
    %v405 = vadd.f32 %v289, %v377
    %v406 = vadd.f32 %v294, %v381
    %v407 = vadd.f32 %v299, %v385
    %v408 = vadd.f32 %v304, %v389
    %v409 = vadd.f32 %v309, %v393
    %v410 = vmax.f32 %v402, 0.0
    %v411 = vmax.f32 %v403, 0.0
    %v412 = vmax.f32 %v404, 0.0
    %v413 = vmax.f32 %v405, 0.0
    %v414 = vmax.f32 %v406, 0.0
    %v415 = vmax.f32 %v407, 0.0
    %v416 = vmax.f32 %v408, 0.0
    %v417 = vmax.f32 %v409, 0.0
    %v418 = vld [vmem:[%s5] sm:$0x1]
    %v420 = vlaneseq
    %v421 = vshrl.u32 %v420, 7
    %v422 = vsub.s32 0, %v421
    %v423 = vrot.slane %v418, %v422
    %v425 = vmul.f32 %v410, %v423
    %v426 = vmul.f32 %v411, %v423
    %v427 = vmul.f32 %v412, %v423
    %v428 = vmul.f32 %v413, %v423
    %v429 = vmul.f32 %v414, %v423
    %v430 = vmul.f32 %v415, %v423
    %v431 = vmul.f32 %v416, %v423
    %v432 = vmul.f32 %v417, %v423
    %433 = vadd.xlane.f32.xlu0 %v425
    %v434 = vpop.xlane.xlu0 %433
    %435 = vadd.xlane.f32.xlu0 %v426
    %v436 = vpop.xlane.xlu0 %435
    %437 = vadd.xlane.f32.xlu0 %v427
    %v438 = vpop.xlane.xlu0 %437
    %439 = vadd.xlane.f32.xlu0 %v428
    %v440 = vpop.xlane.xlu0 %439
    %441 = vadd.xlane.f32.xlu0 %v429
    %v442 = vpop.xlane.xlu0 %441
    %443 = vadd.xlane.f32.xlu0 %v430
    %v444 = vpop.xlane.xlu0 %443
    %445 = vadd.xlane.f32.xlu0 %v431
    %v446 = vpop.xlane.xlu0 %445
    %447 = vadd.xlane.f32.xlu0 %v432
    %v448 = vpop.xlane.xlu0 %447
    %v449 = vmul.f32 %v434, 10.0
    %v450 = vmul.f32 %v436, 10.0
    %v451 = vmul.f32 %v438, 10.0
    %v452 = vmul.f32 %v440, 10.0
    %v453 = vmul.f32 %v442, 10.0
    %v454 = vmul.f32 %v444, 10.0
    %v455 = vmul.f32 %v446, 10.0
    %v456 = vmul.f32 %v448, 10.0
    %v465 = vlaneseq
    %v466 = vand.u32 %v465, 127
    %v467 = vlaneseq
    %v468 = vshrl.u32 %v467, 7
    %v469 = vsub.s32 %v466, %v468
    %v470 = vrot.slane %v449, %v469
    %v471 = vlaneseq
    %v472 = vshrl.u32 %v471, 7
    %v473 = vsub.s32 %v466, %v472
    %v474 = vrot.slane %v450, %v473
    %v475 = vlaneseq
    %v476 = vshrl.u32 %v475, 7
    %v477 = vsub.s32 %v466, %v476
    %v478 = vrot.slane %v451, %v477
    %v479 = vlaneseq
    %v480 = vshrl.u32 %v479, 7
    %v481 = vsub.s32 %v466, %v480
    %v482 = vrot.slane %v452, %v481
    %v483 = vlaneseq
    %v484 = vshrl.u32 %v483, 7
    %v485 = vsub.s32 %v466, %v484
    %v486 = vrot.slane %v453, %v485
    %v487 = vlaneseq
    %v488 = vshrl.u32 %v487, 7
    %v489 = vsub.s32 %v466, %v488
    %v490 = vrot.slane %v454, %v489
    %v491 = vlaneseq
    %v492 = vshrl.u32 %v491, 7
    %v493 = vsub.s32 %v466, %v492
    %v494 = vrot.slane %v455, %v493
    %v495 = vlaneseq
    %v496 = vshrl.u32 %v495, 7
    %v497 = vsub.s32 %v466, %v496
    %v498 = vrot.slane %v456, %v497
    %vm499 = vcmask 1041409
    %v500 = vsel %vm499, %v474, %v470
    %vm501 = vcmask 1042434
    %v502 = vsel %vm501, %v478, %v500
    %vm503 = vcmask 1043459
    %v504 = vsel %vm503, %v482, %v502
    %vm505 = vcmask 1044484
    %v506 = vsel %vm505, %v486, %v504
    %vm507 = vcmask 1045509
    %v508 = vsel %vm507, %v490, %v506
    %vm509 = vcmask 1046534
    %v510 = vsel %vm509, %v494, %v508
    %vm511 = vcmask 1047559
    %v512 = vsel %vm511, %v498, %v510
    %vm514 = vcmask 64512
    %v515 = vsel %vm514, %v512, -inf
    %516 = vmax.xlane.f32.xlu0 %v515
    %v517 = vpop.xlane.xlu0 %516
    %v519 = vlaneseq
    %v520 = vshrl.u32 %v519, 7
    %v521 = vsub.s32 0, %v520
    %v522 = vrot.slane %v517, %v521
    %v523 = vlaneseq
    %v524 = vshrl.u32 %v523, 7
    %v525 = vsub.s32 1, %v524
    %v526 = vrot.slane %v517, %v525
    %v527 = vlaneseq
    %v528 = vshrl.u32 %v527, 7
    %v529 = vsub.s32 2, %v528
    %v530 = vrot.slane %v517, %v529
    %v531 = vlaneseq
    %v532 = vshrl.u32 %v531, 7
    %v533 = vsub.s32 3, %v532
    %v534 = vrot.slane %v517, %v533
    %v535 = vlaneseq
    %v536 = vshrl.u32 %v535, 7
    %v537 = vsub.s32 4, %v536
    %v538 = vrot.slane %v517, %v537
    %v539 = vlaneseq
    %v540 = vshrl.u32 %v539, 7
    %v541 = vsub.s32 5, %v540
    %v542 = vrot.slane %v517, %v541
    %v543 = vlaneseq
    %v544 = vshrl.u32 %v543, 7
    %v545 = vsub.s32 6, %v544
    %v546 = vrot.slane %v517, %v545
    %v547 = vlaneseq
    %v548 = vshrl.u32 %v547, 7
    %v549 = vsub.s32 7, %v548
    %v550 = vrot.slane %v517, %v549
    %v559 = vsub.f32 %v449, %v522
    %v560 = vsub.f32 %v450, %v526
    %v561 = vsub.f32 %v451, %v530
    %v562 = vsub.f32 %v452, %v534
    %v563 = vsub.f32 %v453, %v538
    %v564 = vsub.f32 %v454, %v542
    %v565 = vsub.f32 %v455, %v546
    %v566 = vsub.f32 %v456, %v550
    %v567 = vmul.f32 %v559, 1.442695
    %v568 = vpow.pop %v567
    %v569 = vmul.f32 %v560, 1.442695
    %v570 = vpow.pop %v569
    %v571 = vmul.f32 %v561, 1.442695
    %v572 = vpow.pop %v571
    %v573 = vmul.f32 %v562, 1.442695
    %v574 = vpow.pop %v573
    %v575 = vmul.f32 %v563, 1.442695
    %v576 = vpow.pop %v575
    %v577 = vmul.f32 %v564, 1.442695
    %v578 = vpow.pop %v577
    %v579 = vmul.f32 %v565, 1.442695
    %v580 = vpow.pop %v579
    %v581 = vmul.f32 %v566, 1.442695
    %v582 = vpow.pop %v581
    %591 = vset.pattern.permute.xlu0 0
    %592 = vperm.xlu0 %591, %v568
    %v593 = vpop.permute.xlu0 %592
    %594 = vset.pattern.permute.xlu0 0
    %595 = vperm.xlu0 %594, %v570
    %v596 = vpop.permute.xlu0 %595
    %597 = vset.pattern.permute.xlu0 0
    %598 = vperm.xlu0 %597, %v572
    %v599 = vpop.permute.xlu0 %598
    %600 = vset.pattern.permute.xlu0 0
    %601 = vperm.xlu0 %600, %v574
    %v602 = vpop.permute.xlu0 %601
    %603 = vset.pattern.permute.xlu0 0
    %604 = vperm.xlu0 %603, %v576
    %v605 = vpop.permute.xlu0 %604
    %606 = vset.pattern.permute.xlu0 0
    %607 = vperm.xlu0 %606, %v578
    %v608 = vpop.permute.xlu0 %607
    %609 = vset.pattern.permute.xlu0 0
    %610 = vperm.xlu0 %609, %v580
    %v611 = vpop.permute.xlu0 %610
    %612 = vset.pattern.permute.xlu0 0
    %613 = vperm.xlu0 %612, %v582
    %v614 = vpop.permute.xlu0 %613
    %v615 = vlaneseq
    %v616 = vshrl.u32 %v615, 7
    %v617 = vsub.s32 %v466, %v616
    %v618 = vrot.slane %v593, %v617
    %v619 = vlaneseq
    %v620 = vshrl.u32 %v619, 7
    %v621 = vsub.s32 %v466, %v620
    %v622 = vrot.slane %v596, %v621
    %v623 = vlaneseq
    %v624 = vshrl.u32 %v623, 7
    %v625 = vsub.s32 %v466, %v624
    %v626 = vrot.slane %v599, %v625
    %v627 = vlaneseq
    %v628 = vshrl.u32 %v627, 7
    %v629 = vsub.s32 %v466, %v628
    %v630 = vrot.slane %v602, %v629
    %v631 = vlaneseq
    %v632 = vshrl.u32 %v631, 7
    %v633 = vsub.s32 %v466, %v632
    %v634 = vrot.slane %v605, %v633
    %v635 = vlaneseq
    %v636 = vshrl.u32 %v635, 7
    %v637 = vsub.s32 %v466, %v636
    %v638 = vrot.slane %v608, %v637
    %v639 = vlaneseq
    %v640 = vshrl.u32 %v639, 7
    %v641 = vsub.s32 %v466, %v640
    %v642 = vrot.slane %v611, %v641
    %v643 = vlaneseq
    %v644 = vshrl.u32 %v643, 7
    %v645 = vsub.s32 %v466, %v644
    %v646 = vrot.slane %v614, %v645
    %v647 = vsel %vm499, %v622, %v618
    %v648 = vsel %vm501, %v626, %v647
    %v649 = vsel %vm503, %v630, %v648
    %v650 = vsel %vm505, %v634, %v649
    %v651 = vsel %vm507, %v638, %v650
    %v652 = vsel %vm509, %v642, %v651
    %v653 = vsel %vm511, %v646, %v652
    %v655 = vsel %vm514, %v653, 0.0
    %656 = vadd.xlane.f32.xlu0 %v655
    %v657 = vpop.xlane.xlu0 %656
    %v658 = vrcp.pop %v657
    %v659 = vmul.f32 1.0, %v658
    %v661 = vlaneseq
    %v662 = vshrl.u32 %v661, 7
    %v663 = vsub.s32 0, %v662
    %v664 = vrot.slane %v659, %v663
    %v665 = vlaneseq
    %v666 = vshrl.u32 %v665, 7
    %v667 = vsub.s32 1, %v666
    %v668 = vrot.slane %v659, %v667
    %v669 = vlaneseq
    %v670 = vshrl.u32 %v669, 7
    %v671 = vsub.s32 2, %v670
    %v672 = vrot.slane %v659, %v671
    %v673 = vlaneseq
    %v674 = vshrl.u32 %v673, 7
    %v675 = vsub.s32 3, %v674
    %v676 = vrot.slane %v659, %v675
    %v677 = vlaneseq
    %v678 = vshrl.u32 %v677, 7
    %v679 = vsub.s32 4, %v678
    %v680 = vrot.slane %v659, %v679
    %v681 = vlaneseq
    %v682 = vshrl.u32 %v681, 7
    %v683 = vsub.s32 5, %v682
    %v684 = vrot.slane %v659, %v683
    %v685 = vlaneseq
    %v686 = vshrl.u32 %v685, 7
    %v687 = vsub.s32 6, %v686
    %v688 = vrot.slane %v659, %v687
    %v689 = vlaneseq
    %v690 = vshrl.u32 %v689, 7
    %v691 = vsub.s32 7, %v690
    %v692 = vrot.slane %v659, %v691
    %v701 = vmul.f32 %v568, %v664
    %v702 = vmul.f32 %v570, %v668
    %v703 = vmul.f32 %v572, %v672
    %v704 = vmul.f32 %v574, %v676
    %v705 = vmul.f32 %v576, %v680
    %v706 = vmul.f32 %v578, %v684
    %v707 = vmul.f32 %v580, %v688
    %v708 = vmul.f32 %v582, %v692
    %717 = vset.pattern.permute.xlu0 0
    %718 = vperm.xlu0 %717, %v701
    %v719 = vpop.permute.xlu0 %718
    %720 = vset.pattern.permute.xlu0 0
    %721 = vperm.xlu0 %720, %v702
    %v722 = vpop.permute.xlu0 %721
    %723 = vset.pattern.permute.xlu0 0
    %724 = vperm.xlu0 %723, %v703
    %v725 = vpop.permute.xlu0 %724
    %726 = vset.pattern.permute.xlu0 0
    %727 = vperm.xlu0 %726, %v704
    %v728 = vpop.permute.xlu0 %727
    %729 = vset.pattern.permute.xlu0 0
    %730 = vperm.xlu0 %729, %v705
    %v731 = vpop.permute.xlu0 %730
    %732 = vset.pattern.permute.xlu0 0
    %733 = vperm.xlu0 %732, %v706
    %v734 = vpop.permute.xlu0 %733
    %735 = vset.pattern.permute.xlu0 0
    %736 = vperm.xlu0 %735, %v707
    %v737 = vpop.permute.xlu0 %736
    %738 = vset.pattern.permute.xlu0 0
    %739 = vperm.xlu0 %738, %v708
    %v740 = vpop.permute.xlu0 %739
    %v741 = vlaneseq
    %v742 = vshrl.u32 %v741, 7
    %v743 = vsub.s32 %v466, %v742
    %v744 = vrot.slane %v719, %v743
    %v745 = vlaneseq
    %v746 = vshrl.u32 %v745, 7
    %v747 = vsub.s32 %v466, %v746
    %v748 = vrot.slane %v722, %v747
    %v749 = vlaneseq
    %v750 = vshrl.u32 %v749, 7
    %v751 = vsub.s32 %v466, %v750
    %v752 = vrot.slane %v725, %v751
    %v753 = vlaneseq
    %v754 = vshrl.u32 %v753, 7
    %v755 = vsub.s32 %v466, %v754
    %v756 = vrot.slane %v728, %v755
    %v757 = vlaneseq
    %v758 = vshrl.u32 %v757, 7
    %v759 = vsub.s32 %v466, %v758
    %v760 = vrot.slane %v731, %v759
    %v761 = vlaneseq
    %v762 = vshrl.u32 %v761, 7
    %v763 = vsub.s32 %v466, %v762
    %v764 = vrot.slane %v734, %v763
    %v765 = vlaneseq
    %v766 = vshrl.u32 %v765, 7
    %v767 = vsub.s32 %v466, %v766
    %v768 = vrot.slane %v737, %v767
    %v769 = vlaneseq
    %v770 = vshrl.u32 %v769, 7
    %v771 = vsub.s32 %v466, %v770
    %v772 = vrot.slane %v740, %v771
    %v773 = vsel %vm499, %v748, %v744
    %v774 = vsel %vm501, %v752, %v773
    %v775 = vsel %vm503, %v756, %v774
    %v776 = vsel %vm505, %v760, %v775
    %v777 = vsel %vm507, %v764, %v776
    %v778 = vsel %vm509, %v768, %v777
    %v779 = vsel %vm511, %v772, %v778
    %781 = vst.msk [vmem:[#allocation11] sm:$0xff] %vm514, %v779
    %v790 = vmul.f32 %v719, %v80
    %v791 = vmul.f32 %v722, %v81
    %v792 = vmul.f32 %v725, %v82
    %v793 = vmul.f32 %v728, %v83
    %v794 = vmul.f32 %v731, %v84
    %v795 = vmul.f32 %v734, %v85
    %v796 = vmul.f32 %v737, %v86
    %v797 = vmul.f32 %v740, %v87
    %v798 = vsel %vm182, %v790, 0.0
    %v799 = vrot.slane %v798, 4
    %v800 = vadd.f32 %v798, %v799
    %v801 = vrot.slane %v800, 2
    %v802 = vadd.f32 %v800, %v801
    %v803 = vrot.slane %v802, 1
    %v804 = vadd.f32 %v802, %v803
    %v805 = vsel %vm182, %v791, 0.0
    %v806 = vrot.slane %v805, 4
    %v807 = vadd.f32 %v805, %v806
    %v808 = vrot.slane %v807, 2
    %v809 = vadd.f32 %v807, %v808
    %v810 = vrot.slane %v809, 1
    %v811 = vadd.f32 %v809, %v810
    %v812 = vsel %vm182, %v792, 0.0
    %v813 = vrot.slane %v812, 4
    %v814 = vadd.f32 %v812, %v813
    %v815 = vrot.slane %v814, 2
    %v816 = vadd.f32 %v814, %v815
    %v817 = vrot.slane %v816, 1
    %v818 = vadd.f32 %v816, %v817
    %v819 = vsel %vm182, %v793, 0.0
    %v820 = vrot.slane %v819, 4
    %v821 = vadd.f32 %v819, %v820
    %v822 = vrot.slane %v821, 2
    %v823 = vadd.f32 %v821, %v822
    %v824 = vrot.slane %v823, 1
    %v825 = vadd.f32 %v823, %v824
    %v826 = vsel %vm182, %v794, 0.0
    %v827 = vrot.slane %v826, 4
    %v828 = vadd.f32 %v826, %v827
    %v829 = vrot.slane %v828, 2
    %v830 = vadd.f32 %v828, %v829
    %v831 = vrot.slane %v830, 1
    %v832 = vadd.f32 %v830, %v831
    %v833 = vsel %vm182, %v795, 0.0
    %v834 = vrot.slane %v833, 4
    %v835 = vadd.f32 %v833, %v834
    %v836 = vrot.slane %v835, 2
    %v837 = vadd.f32 %v835, %v836
    %v838 = vrot.slane %v837, 1
    %v839 = vadd.f32 %v837, %v838
    %v840 = vsel %vm182, %v796, 0.0
    %v841 = vrot.slane %v840, 4
    %v842 = vadd.f32 %v840, %v841
    %v843 = vrot.slane %v842, 2
    %v844 = vadd.f32 %v842, %v843
    %v845 = vrot.slane %v844, 1
    %v846 = vadd.f32 %v844, %v845
    %v847 = vsel %vm182, %v797, 0.0
    %v848 = vrot.slane %v847, 4
    %v849 = vadd.f32 %v847, %v848
    %v850 = vrot.slane %v849, 2
    %v851 = vadd.f32 %v849, %v850
    %v852 = vrot.slane %v851, 1
    %v853 = vadd.f32 %v851, %v852
    %v862 = vsel %vm499, %v811, %v804
    %v863 = vsel %vm501, %v818, %v862
    %v864 = vsel %vm503, %v825, %v863
    %v865 = vsel %vm505, %v832, %v864
    %v866 = vsel %vm507, %v839, %v865
    %v867 = vsel %vm509, %v846, %v866
    %v868 = vsel %vm511, %v853, %v867
    %870 = vst.msk [vmem:[#allocation10] sm:$0xff] %vm182, %v868
    // Predicated region
    $region42: #{tpu_custom_call.1} parent=1 // pred_check
      _
    $region43: #{tpu_custom_call.1} parent=1 // pred_check_branch
      %872 = sbr.rel (0) target = $region45
    $region44: #{tpu_custom_call.1} parent=1 // pred_region
      %s874 = ssub.s32 128, 128
      %875 = vsyncadd [#allocation4], %s874
      %s877 = sshll.u32 [#allocation10], 4
      %s878 = int_to_ptr.vmem [resolvable:$true] %s877
      %880 = dma.vmem_to_hbm [thread:$0]  %s878, 128, %s6, [#allocation4]
    $region45: #{tpu_custom_call.1} parent=1 // pred_fallthru
      _
    // Predicated region
    $region46: #{tpu_custom_call.1} parent=1 // pred_check
      _
    $region47: #{tpu_custom_call.1} parent=1 // pred_check_branch
      %882 = sbr.rel (0) target = $region49
    $region48: #{tpu_custom_call.1} parent=1 // pred_region
      %s884 = ssub.s32 128, 128
      %885 = vsyncadd [#allocation12], %s884
      %s887 = sshll.u32 [#allocation11], 4
      %s888 = int_to_ptr.vmem [resolvable:$true] %s887
      %890 = dma.vmem_to_hbm [thread:$0]  %s888, 128, %s7, [#allocation12]
    $region49: #{tpu_custom_call.1} parent=1 // pred_fallthru
      _
    // Predicated region
    $region50: #{tpu_custom_call.1} parent=1 // pred_check
      _
    $region51: #{tpu_custom_call.1} parent=1 // pred_check_branch
      %892 = sbr.rel (0) target = $region53
    $region52: #{tpu_custom_call.1} parent=1 // pred_region
      %893 = dma.done [#allocation4], 128
    $region53: #{tpu_custom_call.1} parent=1 // pred_fallthru
      _
    // Predicated region
    $region54: #{tpu_custom_call.1} parent=1 // pred_check
      _
    $region55: #{tpu_custom_call.1} parent=1 // pred_check_branch
      %895 = sbr.rel (0) target = $region57
    $region56: #{tpu_custom_call.1} parent=1 // pred_region
      %896 = dma.done [#allocation12], 128
    $region57: #{tpu_custom_call.1} parent=1 // pred_fallthru
      _
    %897 = vsyncpa [#allocation3], 1
    %898 = vsyncpa [#allocation6], 1
    %899 = vsyncpa [#allocation9], 1
    %900 = vsyncpa [#allocation4], 1
    %901 = vsyncpa [#allocation12], 1

</llo_original>
